<compile_context>
chip_gen: v6e
topology: v6e:2x2x1
jax: 0.10.0
libtpu: 0.0.40
codegen_flags: <defaults>
</compile_context>

<pallas_src>
import jax
import jax.numpy as jnp
from jax import lax
from jax.experimental import pallas as pl
from jax.experimental.pallas import tpu as pltpu

_LN_EPS = 1e-5
_SQRT2 = 1.4142135623730951


# ---------------------------------------------------------------------------
# Fused kernel (entire TaskHead in one body; layer loop unrolls at trace time)
# ---------------------------------------------------------------------------
def _make_fused_kernel(num_blocks: int, use_se: bool):
    n_per_block = 6 if use_se else 4

    def kernel(*refs):
        x_ref = refs[0]
        o_ref = refs[-1]
        h = x_ref[...].astype(jnp.float32)
        idx = 1
        for _ in range(num_blocks):
            wt_ref, b_ref, g_ref, beta_ref = refs[idx:idx + 4]
            if use_se:
                se1_ref, se2_ref = refs[idx + 4:idx + 6]
            idx += n_per_block

            # Linear
            h = jnp.dot(h, wt_ref[...],
                        preferred_element_type=jnp.float32) + b_ref[...]
            # LayerNorm (biased variance, eps=1e-5); gamma folded into rsqrt
            mean = jnp.mean(h, axis=-1, keepdims=True)
            var = jnp.mean((h - mean) ** 2, axis=-1, keepdims=True)
            inv = lax.rsqrt(var + _LN_EPS)
            h = (h - mean) * (g_ref[...] * inv) + beta_ref[...]
            # Exact (erf) GELU — PyTorch nn.GELU() default
            h = 0.5 * h * (1.0 + lax.erf(h / _SQRT2))
            # TODO(synk): nn.Dropout implemented as eval-mode identity only.
            if use_se:
                # SEBlock, 2-D path: s = x; scale = sigmoid(W2 @ silu(W1 @ s))
                z = jnp.dot(h, se1_ref[...],
                            preferred_element_type=jnp.float32)
                z = z * jax.nn.sigmoid(z)                        # SiLU
                scale = jax.nn.sigmoid(
                    jnp.dot(z, se2_ref[...],
                            preferred_element_type=jnp.float32))
                h = h * scale

        # Final Linear
        fwt_ref, fb_ref = refs[idx], refs[idx + 1]
        y = jnp.dot(h, fwt_ref[...],
                    preferred_element_type=jnp.float32) + fb_ref[...]
        o_ref[...] = y.astype(o_ref.dtype)

    return kernel


# ---------------------------------------------------------------------------
# Wrappers
# ---------------------------------------------------------------------------
def _flatten_inputs(params, x):
    inputs = [x]
    use_se = params["use_se"]
    for blk in params["blocks"]:
        inputs += [blk["w_t"], blk["b"], blk["gamma"], blk["beta"]]
        if use_se:
            inputs += [blk["se_w1_t"], blk["se_w2_t"]]
    inputs += [params["final_w_t"], params["final_b"]]
    return inputs


def _fused_call_single(params, x):
    """Grid-less call: whole arrays in VMEM, no pipeline overhead."""
    inputs = _flatten_inputs(params, x)
    kernel = _make_fused_kernel(len(params["blocks"]), params["use_se"])
    out_dim = params["final_w_t"].shape[1]
    out_shape = jax.ShapeDtypeStruct((x.shape[0], out_dim), jnp.float32)
    return pl.pallas_call(
        kernel,
        out_shape=out_shape,
        in_specs=[pl.BlockSpec(memory_space=pltpu.MemorySpace.VMEM)
                  for _ in inputs],
        out_specs=pl.BlockSpec(memory_space=pltpu.MemorySpace.VMEM),
    )(*inputs)


def _fused_call_tiled(params, x, batch_tile):
    """Batch-tiled call: weights VMEM-resident across tiles, batch parallel."""
    B, d_in = x.shape
    use_se = params["use_se"]
    kernel = _make_fused_kernel(len(params["blocks"]), use_se)
    out_dim = params["final_w_t"].shape[1]

    inputs = _flatten_inputs(params, x)
    in_specs = [pl.BlockSpec((batch_tile, d_in), lambda i: (i, 0))]
    for a in inputs[1:]:
        # Constant index_map -> weights/biases stay resident across batch tiles.
        in_specs.append(pl.BlockSpec(a.shape, lambda i: (0, 0)))
    out_specs = pl.BlockSpec((batch_tile, out_dim), lambda i: (i, 0))

    return pl.pallas_call(
        kernel,
        out_shape=jax.ShapeDtypeStruct((B, out_dim), jnp.float32),
        grid=(pl.cdiv(B, batch_tile),),
        in_specs=in_specs,
        out_specs=out_specs,
        compiler_params=pltpu.CompilerParams(
            dimension_semantics=("parallel",)),
    )(*inputs)


def task_head_forward(params, x, batch_tile=512):
    """Full TaskHead forward in one pallas_call."""
    batch_tile = max(8, (batch_tile // 8) * 8)   # sublane-aligned tile
    if x.shape[0] <= batch_tile:
        return _fused_call_single(params, x)
    return _fused_call_tiled(params, x, batch_tile)


# ---------------------------------------------------------------------------
# Parameters (kernel layout produced ONCE here: transposed weights, (1,d) rows)
# ---------------------------------------------------------------------------
def init_task_head(key, input_dim, output_dim, hidden_dims,
                   use_se=False, se_reduction=16):
    dims = [input_dim] + list(hidden_dims)
    params = {"blocks": [], "use_se": use_se}
    for i in range(len(hidden_dims)):
        key, kw, kb, k1, k2 = jax.random.split(key, 5)
        d_in, d_out = dims[i], dims[i + 1]
        w = jax.random.normal(kw, (d_out, d_in), jnp.float32) * 0.05  # [out,in]
        blk = {
            "w_t": jnp.transpose(w),                                  # [in,out]
            "b": (jax.random.normal(kb, (d_out,), jnp.float32)
                  * 0.01).reshape(1, d_out),
            "gamma": jnp.ones((1, d_out), jnp.float32),
            "beta": jnp.zeros((1, d_out), jnp.float32),
        }
        if use_se:
            d_red = d_out // se_reduction
            se_w1 = jax.random.normal(k1, (d_red, d_out), jnp.float32) * 0.1
            se_w2 = jax.random.normal(k2, (d_out, d_red), jnp.float32) * 0.1
            blk["se_w1_t"] = jnp.transpose(se_w1)                     # [d_out,d_red]
            blk["se_w2_t"] = jnp.transpose(se_w2)                     # [d_red,d_out]
        params["blocks"].append(blk)
    key, kw, kb = jax.random.split(key, 3)
    final_w = jax.random.normal(kw, (output_dim, dims[-1]), jnp.float32) * 0.05
    params["final_w_t"] = jnp.transpose(final_w)
    params["final_b"] = (jax.random.normal(kb, (output_dim,), jnp.float32)
                         * 0.01).reshape(1, output_dim)
    return params


# ---------------------------------------------------------------------------
# Pure-JAX reference (same math) for a sanity check
# ---------------------------------------------------------------------------
def task_head_reference(params, x):
    h = x.astype(jnp.float32)
    for blk in params["blocks"]:
        h = h @ blk["w_t"] + blk["b"]
        mean = jnp.mean(h, axis=-1, keepdims=True)
        var = jnp.mean((h - mean) ** 2, axis=-1, keepdims=True)
        h = (h - mean) * lax.rsqrt(var + _LN_EPS) * blk["gamma"] + blk["beta"]
        h = 0.5 * h * (1.0 + lax.erf(h / _SQRT2))
        if params["use_se"]:
            z = h @ blk["se_w1_t"]
            z = z * jax.nn.sigmoid(z)
            h = h * jax.nn.sigmoid(z @ blk["se_w2_t"])
    return h @ params["final_w_t"] + params["final_b"]


# ---------------------------------------------------------------------------
if __name__ == "__main__":
    key = jax.random.PRNGKey(0)
    key, kx, kp = jax.random.split(key, 3)

    batch = 8
    input_dim = 32
    hidden_dims = [64, 32]
    output_dim = 8
    use_se = True            # exercise SEBlock path (reduction=16 -> 4, 2)

    x = jax.random.normal(kx, (batch, input_dim), jnp.float32)
    params = init_task_head(kp, input_dim, output_dim, hidden_dims,
                            use_se=use_se)

    # Small batch: grid-less fused call.
    out = jax.block_until_ready(task_head_forward(params, x))
    assert out.shape == (batch, output_dim)
    ref = task_head_reference(params, x)
    # Loose tolerance: MXU f32 matmuls may use multi-pass bf16 precision.
    assert jnp.allclose(out, ref, atol=2e-2, rtol=2e-2)

    # Large batch: batch-tiled path (weights resident, batch axis parallel).
    x_big = jax.random.normal(jax.random.PRNGKey(1), (1024, input_dim),
                              jnp.float32)
    out_big = jax.block_until_ready(
        task_head_forward(params, x_big, batch_tile=256))
    assert out_big.shape == (1024, output_dim)
    out_big_single = jax.block_until_ready(_fused_call_single(params, x_big))
    assert jnp.allclose(out_big, out_big_single, atol=1e-5, rtol=1e-5)

    print("KERNEL_OK")
</pallas_src>

<mosaic_0001>
module attributes {stable_mosaic.version = 11 : i64} {
  func.func @kernel(%arg0: memref<8x32xf32, #tpu.memory_space<vmem>>, %arg1: memref<32x64xf32, #tpu.memory_space<vmem>>, %arg2: memref<1x64xf32, #tpu.memory_space<vmem>>, %arg3: memref<1x64xf32, #tpu.memory_space<vmem>>, %arg4: memref<1x64xf32, #tpu.memory_space<vmem>>, %arg5: memref<64x4xf32, #tpu.memory_space<vmem>>, %arg6: memref<4x64xf32, #tpu.memory_space<vmem>>, %arg7: memref<64x32xf32, #tpu.memory_space<vmem>>, %arg8: memref<1x32xf32, #tpu.memory_space<vmem>>, %arg9: memref<1x32xf32, #tpu.memory_space<vmem>>, %arg10: memref<1x32xf32, #tpu.memory_space<vmem>>, %arg11: memref<32x2xf32, #tpu.memory_space<vmem>>, %arg12: memref<2x32xf32, #tpu.memory_space<vmem>>, %arg13: memref<32x8xf32, #tpu.memory_space<vmem>>, %arg14: memref<1x8xf32, #tpu.memory_space<vmem>>, %arg15: memref<8x8xf32, #tpu.memory_space<vmem>>) attributes {dimension_semantics = [], scalar_prefetch = 0 : i64, scratch_operands = 0 : i64, tpu.core_type = #tpu.core_type<tc>} {
    %c0 = arith.constant 0 : index
    %c0_0 = arith.constant 0 : index
    %0 = vector.load %arg0[%c0, %c0_0] : memref<8x32xf32, #tpu.memory_space<vmem>>, vector<8x32xf32>
    %c0_1 = arith.constant 0 : index
    %c0_2 = arith.constant 0 : index
    %1 = vector.load %arg1[%c0_1, %c0_2] : memref<32x64xf32, #tpu.memory_space<vmem>>, vector<32x64xf32>
    %cst = arith.constant dense<0.000000e+00> : vector<8x64xf32>
    %2 = tpu.matmul %0, %1, %cst {dimension_numbers = #tpu.dot_dimension_numbers<[1], [0], [0], [1], [0, 0, 1, 1], [], []>} : vector<8x32xf32>, vector<32x64xf32>, vector<8x64xf32> -> vector<8x64xf32>
    %c0_3 = arith.constant 0 : index
    %c0_4 = arith.constant 0 : index
    %3 = vector.load %arg2[%c0_3, %c0_4] : memref<1x64xf32, #tpu.memory_space<vmem>>, vector<1x64xf32>
    %4 = vector.broadcast %3 : vector<1x64xf32> to vector<8x64xf32>
    %5 = arith.addf %2, %4 : vector<8x64xf32>
    %cst_5 = arith.constant dense<0.000000e+00> : vector<8xf32>
    %6 = vector.multi_reduction <add>, %5, %cst_5 [1] : vector<8x64xf32> to vector<8xf32>
    %7 = vector.shape_cast %6 : vector<8xf32> to vector<8x1xf32>
    %cst_6 = arith.constant 6.400000e+01 : f32
    %8 = vector.broadcast %cst_6 : f32 to vector<8x1xf32>
    %9 = arith.divf %7, %8 : vector<8x1xf32>
    %10 = vector.broadcast %9 : vector<8x1xf32> to vector<8x64xf32>
    %11 = arith.subf %5, %10 : vector<8x64xf32>
    %12 = arith.mulf %11, %11 : vector<8x64xf32>
    %cst_7 = arith.constant dense<0.000000e+00> : vector<8xf32>
    %13 = vector.multi_reduction <add>, %12, %cst_7 [1] : vector<8x64xf32> to vector<8xf32>
    %14 = vector.shape_cast %13 : vector<8xf32> to vector<8x1xf32>
    %cst_8 = arith.constant 6.400000e+01 : f32
    %15 = vector.broadcast %cst_8 : f32 to vector<8x1xf32>
    %16 = arith.divf %14, %15 : vector<8x1xf32>
    %cst_9 = arith.constant 9.99999974E-6 : f32
    %17 = vector.broadcast %cst_9 : f32 to vector<8x1xf32>
    %18 = arith.addf %16, %17 : vector<8x1xf32>
    %19 = math.rsqrt %18 : vector<8x1xf32>
    %20 = vector.broadcast %9 : vector<8x1xf32> to vector<8x64xf32>
    %21 = arith.subf %5, %20 : vector<8x64xf32>
    %c0_10 = arith.constant 0 : index
    %c0_11 = arith.constant 0 : index
    %22 = vector.load %arg3[%c0_10, %c0_11] : memref<1x64xf32, #tpu.memory_space<vmem>>, vector<1x64xf32>
    %23 = vector.broadcast %22 : vector<1x64xf32> to vector<8x64xf32>
    %24 = vector.broadcast %19 : vector<8x1xf32> to vector<8x64xf32>
    %25 = arith.mulf %23, %24 : vector<8x64xf32>
    %26 = arith.mulf %21, %25 : vector<8x64xf32>
    %c0_12 = arith.constant 0 : index
    %c0_13 = arith.constant 0 : index
    %27 = vector.load %arg4[%c0_12, %c0_13] : memref<1x64xf32, #tpu.memory_space<vmem>>, vector<1x64xf32>
    %28 = vector.broadcast %27 : vector<1x64xf32> to vector<8x64xf32>
    %29 = arith.addf %26, %28 : vector<8x64xf32>
    %cst_14 = arith.constant 5.000000e-01 : f32
    %30 = vector.broadcast %cst_14 : f32 to vector<8x64xf32>
    %31 = arith.mulf %30, %29 : vector<8x64xf32>
    %cst_15 = arith.constant 1.41421354 : f32
    %32 = vector.broadcast %cst_15 : f32 to vector<8x64xf32>
    %33 = arith.divf %29, %32 : vector<8x64xf32>
    %34 = math.erf %33 : vector<8x64xf32>
    %cst_16 = arith.constant 1.000000e+00 : f32
    %35 = vector.broadcast %cst_16 : f32 to vector<8x64xf32>
    %36 = arith.addf %35, %34 : vector<8x64xf32>
    %37 = arith.mulf %31, %36 : vector<8x64xf32>
    %c0_17 = arith.constant 0 : index
    %c0_18 = arith.constant 0 : index
    %38 = vector.load %arg5[%c0_17, %c0_18] : memref<64x4xf32, #tpu.memory_space<vmem>>, vector<64x4xf32>
    %cst_19 = arith.constant dense<0.000000e+00> : vector<8x4xf32>
    %39 = tpu.matmul %37, %38, %cst_19 {dimension_numbers = #tpu.dot_dimension_numbers<[1], [0], [0], [1], [0, 0, 1, 1], [], []>} : vector<8x64xf32>, vector<64x4xf32>, vector<8x4xf32> -> vector<8x4xf32>
    %40 = arith.negf %39 : vector<8x4xf32>
    %41 = math.exp %40 : vector<8x4xf32>
    %cst_20 = arith.constant 1.000000e+00 : f32
    %42 = vector.broadcast %cst_20 : f32 to vector<8x4xf32>
    %43 = arith.addf %42, %41 : vector<8x4xf32>
    %44 = arith.divf %42, %43 : vector<8x4xf32>
    %45 = arith.mulf %39, %44 : vector<8x4xf32>
    %c0_21 = arith.constant 0 : index
    %c0_22 = arith.constant 0 : index
    %46 = vector.load %arg6[%c0_21, %c0_22] : memref<4x64xf32, #tpu.memory_space<vmem>>, vector<4x64xf32>
    %cst_23 = arith.constant dense<0.000000e+00> : vector<8x64xf32>
    %47 = tpu.matmul %45, %46, %cst_23 {dimension_numbers = #tpu.dot_dimension_numbers<[1], [0], [0], [1], [0, 0, 1, 1], [], []>} : vector<8x4xf32>, vector<4x64xf32>, vector<8x64xf32> -> vector<8x64xf32>
    %48 = arith.negf %47 : vector<8x64xf32>
    %49 = math.exp %48 : vector<8x64xf32>
    %cst_24 = arith.constant 1.000000e+00 : f32
    %50 = vector.broadcast %cst_24 : f32 to vector<8x64xf32>
    %51 = arith.addf %50, %49 : vector<8x64xf32>
    %52 = arith.divf %50, %51 : vector<8x64xf32>
    %53 = arith.mulf %37, %52 : vector<8x64xf32>
    %c0_25 = arith.constant 0 : index
    %c0_26 = arith.constant 0 : index
    %54 = vector.load %arg7[%c0_25, %c0_26] : memref<64x32xf32, #tpu.memory_space<vmem>>, vector<64x32xf32>
    %cst_27 = arith.constant dense<0.000000e+00> : vector<8x32xf32>
    %55 = tpu.matmul %53, %54, %cst_27 {dimension_numbers = #tpu.dot_dimension_numbers<[1], [0], [0], [1], [0, 0, 1, 1], [], []>} : vector<8x64xf32>, vector<64x32xf32>, vector<8x32xf32> -> vector<8x32xf32>
    %c0_28 = arith.constant 0 : index
    %c0_29 = arith.constant 0 : index
    %56 = vector.load %arg8[%c0_28, %c0_29] : memref<1x32xf32, #tpu.memory_space<vmem>>, vector<1x32xf32>
    %57 = vector.broadcast %56 : vector<1x32xf32> to vector<8x32xf32>
    %58 = arith.addf %55, %57 : vector<8x32xf32>
    %cst_30 = arith.constant dense<0.000000e+00> : vector<8xf32>
    %59 = vector.multi_reduction <add>, %58, %cst_30 [1] : vector<8x32xf32> to vector<8xf32>
    %60 = vector.shape_cast %59 : vector<8xf32> to vector<8x1xf32>
    %cst_31 = arith.constant 3.200000e+01 : f32
    %61 = vector.broadcast %cst_31 : f32 to vector<8x1xf32>
    %62 = arith.divf %60, %61 : vector<8x1xf32>
    %63 = vector.broadcast %62 : vector<8x1xf32> to vector<8x32xf32>
    %64 = arith.subf %58, %63 : vector<8x32xf32>
    %65 = arith.mulf %64, %64 : vector<8x32xf32>
    %cst_32 = arith.constant dense<0.000000e+00> : vector<8xf32>
    %66 = vector.multi_reduction <add>, %65, %cst_32 [1] : vector<8x32xf32> to vector<8xf32>
    %67 = vector.shape_cast %66 : vector<8xf32> to vector<8x1xf32>
    %cst_33 = arith.constant 3.200000e+01 : f32
    %68 = vector.broadcast %cst_33 : f32 to vector<8x1xf32>
    %69 = arith.divf %67, %68 : vector<8x1xf32>
    %cst_34 = arith.constant 9.99999974E-6 : f32
    %70 = vector.broadcast %cst_34 : f32 to vector<8x1xf32>
    %71 = arith.addf %69, %70 : vector<8x1xf32>
    %72 = math.rsqrt %71 : vector<8x1xf32>
    %73 = vector.broadcast %62 : vector<8x1xf32> to vector<8x32xf32>
    %74 = arith.subf %58, %73 : vector<8x32xf32>
    %c0_35 = arith.constant 0 : index
    %c0_36 = arith.constant 0 : index
    %75 = vector.load %arg9[%c0_35, %c0_36] : memref<1x32xf32, #tpu.memory_space<vmem>>, vector<1x32xf32>
    %76 = vector.broadcast %75 : vector<1x32xf32> to vector<8x32xf32>
    %77 = vector.broadcast %72 : vector<8x1xf32> to vector<8x32xf32>
    %78 = arith.mulf %76, %77 : vector<8x32xf32>
    %79 = arith.mulf %74, %78 : vector<8x32xf32>
    %c0_37 = arith.constant 0 : index
    %c0_38 = arith.constant 0 : index
    %80 = vector.load %arg10[%c0_37, %c0_38] : memref<1x32xf32, #tpu.memory_space<vmem>>, vector<1x32xf32>
    %81 = vector.broadcast %80 : vector<1x32xf32> to vector<8x32xf32>
    %82 = arith.addf %79, %81 : vector<8x32xf32>
    %cst_39 = arith.constant 5.000000e-01 : f32
    %83 = vector.broadcast %cst_39 : f32 to vector<8x32xf32>
    %84 = arith.mulf %83, %82 : vector<8x32xf32>
    %cst_40 = arith.constant 1.41421354 : f32
    %85 = vector.broadcast %cst_40 : f32 to vector<8x32xf32>
    %86 = arith.divf %82, %85 : vector<8x32xf32>
    %87 = math.erf %86 : vector<8x32xf32>
    %cst_41 = arith.constant 1.000000e+00 : f32
    %88 = vector.broadcast %cst_41 : f32 to vector<8x32xf32>
    %89 = arith.addf %88, %87 : vector<8x32xf32>
    %90 = arith.mulf %84, %89 : vector<8x32xf32>
    %c0_42 = arith.constant 0 : index
    %c0_43 = arith.constant 0 : index
    %91 = vector.load %arg11[%c0_42, %c0_43] : memref<32x2xf32, #tpu.memory_space<vmem>>, vector<32x2xf32>
    %cst_44 = arith.constant dense<0.000000e+00> : vector<8x2xf32>
    %92 = tpu.matmul %90, %91, %cst_44 {dimension_numbers = #tpu.dot_dimension_numbers<[1], [0], [0], [1], [0, 0, 1, 1], [], []>} : vector<8x32xf32>, vector<32x2xf32>, vector<8x2xf32> -> vector<8x2xf32>
    %93 = arith.negf %92 : vector<8x2xf32>
    %94 = math.exp %93 : vector<8x2xf32>
    %cst_45 = arith.constant 1.000000e+00 : f32
    %95 = vector.broadcast %cst_45 : f32 to vector<8x2xf32>
    %96 = arith.addf %95, %94 : vector<8x2xf32>
    %97 = arith.divf %95, %96 : vector<8x2xf32>
    %98 = arith.mulf %92, %97 : vector<8x2xf32>
    %c0_46 = arith.constant 0 : index
    %c0_47 = arith.constant 0 : index
    %99 = vector.load %arg12[%c0_46, %c0_47] : memref<2x32xf32, #tpu.memory_space<vmem>>, vector<2x32xf32>
    %cst_48 = arith.constant dense<0.000000e+00> : vector<8x32xf32>
    %100 = tpu.matmul %98, %99, %cst_48 {dimension_numbers = #tpu.dot_dimension_numbers<[1], [0], [0], [1], [0, 0, 1, 1], [], []>} : vector<8x2xf32>, vector<2x32xf32>, vector<8x32xf32> -> vector<8x32xf32>
    %101 = arith.negf %100 : vector<8x32xf32>
    %102 = math.exp %101 : vector<8x32xf32>
    %cst_49 = arith.constant 1.000000e+00 : f32
    %103 = vector.broadcast %cst_49 : f32 to vector<8x32xf32>
    %104 = arith.addf %103, %102 : vector<8x32xf32>
    %105 = arith.divf %103, %104 : vector<8x32xf32>
    %106 = arith.mulf %90, %105 : vector<8x32xf32>
    %c0_50 = arith.constant 0 : index
    %c0_51 = arith.constant 0 : index
    %107 = vector.load %arg13[%c0_50, %c0_51] : memref<32x8xf32, #tpu.memory_space<vmem>>, vector<32x8xf32>
    %cst_52 = arith.constant dense<0.000000e+00> : vector<8x8xf32>
    %108 = tpu.matmul %106, %107, %cst_52 {dimension_numbers = #tpu.dot_dimension_numbers<[1], [0], [0], [1], [0, 0, 1, 1], [], []>} : vector<8x32xf32>, vector<32x8xf32>, vector<8x8xf32> -> vector<8x8xf32>
    %c0_53 = arith.constant 0 : index
    %c0_54 = arith.constant 0 : index
    %109 = vector.load %arg14[%c0_53, %c0_54] : memref<1x8xf32, #tpu.memory_space<vmem>>, vector<1x8xf32>
    %110 = vector.broadcast %109 : vector<1x8xf32> to vector<8x8xf32>
    %111 = arith.addf %108, %110 : vector<8x8xf32>
    %c0_55 = arith.constant 0 : index
    %c0_56 = arith.constant 0 : index
    %112 = vector.load %arg15[%c0_55, %c0_56] : memref<8x8xf32, #tpu.memory_space<vmem>>, vector<8x8xf32>
    tpu.vector_store %arg15[%c0_55, %c0_56], %111 {strides = array<i32>} : memref<8x8xf32, #tpu.memory_space<vmem>>, vector<8x8xf32>,
    return
  }
}

</mosaic_0001>

<llo_original>
// kernel: tpu_custom_call.1
$region0: #{tpu_custom_call.1}
  #allocation0 [shape = 'u32[]', space=smem, size = 0x4, offset = 0x4, fixed_abs, tag = 'smem constant byte address 0x4 - core index']
  #allocation1 [shape = 'u32[144,128]{1,0:T(1,128)}', space=vmem, size = 0x12000, scoped, tag = 'internal scratch']
  %s0 = inlined_call_operand.vmem [shape: f32[8,32], index: 0, kind: input, shape index: {}]
  %s1 = inlined_call_operand.vmem [shape: f32[32,64], index: 1, kind: input, shape index: {}]
  %s2 = inlined_call_operand.vmem [shape: f32[1,64], index: 2, kind: input, shape index: {}]
  %s3 = inlined_call_operand.vmem [shape: f32[1,64], index: 3, kind: input, shape index: {}]
  %s4 = inlined_call_operand.vmem [shape: f32[1,64], index: 4, kind: input, shape index: {}]
  %s5 = inlined_call_operand.vmem [shape: f32[64,4], index: 5, kind: input, shape index: {}]
  %s6 = inlined_call_operand.vmem [shape: f32[4,64], index: 6, kind: input, shape index: {}]
  %s7 = inlined_call_operand.vmem [shape: f32[64,32], index: 7, kind: input, shape index: {}]
  %s8 = inlined_call_operand.vmem [shape: f32[1,32], index: 8, kind: input, shape index: {}]
  %s9 = inlined_call_operand.vmem [shape: f32[1,32], index: 9, kind: input, shape index: {}]
  %s10 = inlined_call_operand.vmem [shape: f32[1,32], index: 10, kind: input, shape index: {}]
  %s11 = inlined_call_operand.vmem [shape: f32[32,2], index: 11, kind: input, shape index: {}]
  %s12 = inlined_call_operand.vmem [shape: f32[2,32], index: 12, kind: input, shape index: {}]
  %s13 = inlined_call_operand.vmem [shape: f32[32,8], index: 13, kind: input, shape index: {}]
  %s14 = inlined_call_operand.vmem [shape: f32[1,8], index: 14, kind: input, shape index: {}]
  %s15 = inlined_call_operand.hbm [shape: f32[8,8], index: 15, kind: output, shape index: {}]
  %s16 = sld [smem:[#allocation0]]
  $region70: #{tpu_custom_call.1} parent=0
    _
  %s18 = ssub.s32 1, %s16
  %s19 = scalar_select 0, %s18, %s16
  $region1: #{tpu_custom_call.1} parent=0
    #allocation2 [shape = 'u8[4096]{0}', space=vmem, size = 0x1000, scoped, tag = 'output window, operand 0, single buffered']
    #allocation3 [shape = 's32[1]{0}', space=sflag, size = 0x4, scoped, tag = 'scoped memory for tpu_custom_call.1']
    %20 = vsyncpa [#allocation3], 0
    // Predicated region
    $region2: #{tpu_custom_call.1} parent=1 // pred_check
      _
    $region3: #{tpu_custom_call.1} parent=1 // pred_check_branch
      %22 = sbr.rel (0) target = $region5
    $region4: #{tpu_custom_call.1} parent=1 // pred_region
      _
    $region5: #{tpu_custom_call.1} parent=1 // pred_fallthru
      _
    // Predicated region
    $region6: #{tpu_custom_call.1} parent=1 // pred_check
      _
    $region7: #{tpu_custom_call.1} parent=1 // pred_check_branch
      %24 = sbr.rel (0) target = $region9
    $region8: #{tpu_custom_call.1} parent=1 // pred_region
      _
    $region9: #{tpu_custom_call.1} parent=1 // pred_fallthru
      _
    // Predicated region
    $region10: #{tpu_custom_call.1} parent=1 // pred_check
      _
    $region11: #{tpu_custom_call.1} parent=1 // pred_check_branch
      %26 = sbr.rel (0) target = $region13
    $region12: #{tpu_custom_call.1} parent=1 // pred_region
      _
    $region13: #{tpu_custom_call.1} parent=1 // pred_fallthru
      _
    // Predicated region
    $region14: #{tpu_custom_call.1} parent=1 // pred_check
      _
    $region15: #{tpu_custom_call.1} parent=1 // pred_check_branch
      %28 = sbr.rel (0) target = $region17
    $region16: #{tpu_custom_call.1} parent=1 // pred_region
      _
    $region17: #{tpu_custom_call.1} parent=1 // pred_fallthru
      _
    // Predicated region
    $region18: #{tpu_custom_call.1} parent=1 // pred_check
      _
    $region19: #{tpu_custom_call.1} parent=1 // pred_check_branch
      %30 = sbr.rel (0) target = $region21
    $region20: #{tpu_custom_call.1} parent=1 // pred_region
      _
    $region21: #{tpu_custom_call.1} parent=1 // pred_fallthru
      _
    // Predicated region
    $region22: #{tpu_custom_call.1} parent=1 // pred_check
      _
    $region23: #{tpu_custom_call.1} parent=1 // pred_check_branch
      %32 = sbr.rel (0) target = $region25
    $region24: #{tpu_custom_call.1} parent=1 // pred_region
      _
    $region25: #{tpu_custom_call.1} parent=1 // pred_fallthru
      _
    // Predicated region
    $region26: #{tpu_custom_call.1} parent=1 // pred_check
      _
    $region27: #{tpu_custom_call.1} parent=1 // pred_check_branch
      %34 = sbr.rel (0) target = $region29
    $region28: #{tpu_custom_call.1} parent=1 // pred_region
      _
    $region29: #{tpu_custom_call.1} parent=1 // pred_fallthru
      _
    // Predicated region
    $region30: #{tpu_custom_call.1} parent=1 // pred_check
      _
    $region31: #{tpu_custom_call.1} parent=1 // pred_check_branch
      %36 = sbr.rel (0) target = $region33
    $region32: #{tpu_custom_call.1} parent=1 // pred_region
      _
    $region33: #{tpu_custom_call.1} parent=1 // pred_fallthru
      _
    // Predicated region
    $region34: #{tpu_custom_call.1} parent=1 // pred_check
      _
    $region35: #{tpu_custom_call.1} parent=1 // pred_check_branch
      %38 = sbr.rel (0) target = $region37
    $region36: #{tpu_custom_call.1} parent=1 // pred_region
      _
    $region37: #{tpu_custom_call.1} parent=1 // pred_fallthru
      _
    // Predicated region
    $region38: #{tpu_custom_call.1} parent=1 // pred_check
      _
    $region39: #{tpu_custom_call.1} parent=1 // pred_check_branch
      %40 = sbr.rel (0) target = $region41
    $region40: #{tpu_custom_call.1} parent=1 // pred_region
      _
    $region41: #{tpu_custom_call.1} parent=1 // pred_fallthru
      _
    // Predicated region
    $region42: #{tpu_custom_call.1} parent=1 // pred_check
      _
    $region43: #{tpu_custom_call.1} parent=1 // pred_check_branch
      %42 = sbr.rel (0) target = $region45
    $region44: #{tpu_custom_call.1} parent=1 // pred_region
      _
    $region45: #{tpu_custom_call.1} parent=1 // pred_fallthru
      _
    // Predicated region
    $region46: #{tpu_custom_call.1} parent=1 // pred_check
      _
    $region47: #{tpu_custom_call.1} parent=1 // pred_check_branch
      %44 = sbr.rel (0) target = $region49
    $region48: #{tpu_custom_call.1} parent=1 // pred_region
      _
    $region49: #{tpu_custom_call.1} parent=1 // pred_fallthru
      _
    // Predicated region
    $region50: #{tpu_custom_call.1} parent=1 // pred_check
      _
    $region51: #{tpu_custom_call.1} parent=1 // pred_check_branch
      %46 = sbr.rel (0) target = $region53
    $region52: #{tpu_custom_call.1} parent=1 // pred_region
      _
    $region53: #{tpu_custom_call.1} parent=1 // pred_fallthru
      _
    // Predicated region
    $region54: #{tpu_custom_call.1} parent=1 // pred_check
      _
    $region55: #{tpu_custom_call.1} parent=1 // pred_check_branch
      %48 = sbr.rel (0) target = $region57
    $region56: #{tpu_custom_call.1} parent=1 // pred_region
      _
    $region57: #{tpu_custom_call.1} parent=1 // pred_fallthru
      _
    // Predicated region
    $region58: #{tpu_custom_call.1} parent=1 // pred_check
      _
    $region59: #{tpu_custom_call.1} parent=1 // pred_check_branch
      %50 = sbr.rel (0) target = $region61
    $region60: #{tpu_custom_call.1} parent=1 // pred_region
      _
    $region61: #{tpu_custom_call.1} parent=1 // pred_fallthru
      _
    %v51 = vld [vmem:[%s0] sm:$0xff]
    %v52 = vld [vmem:[%s1] sm:$0xff]
    %v53 = vld [vmem:[%s1 + $0x8] sm:$0xff]
    %v54 = vld [vmem:[%s1 + $0x10] sm:$0xff]
    %v55 = vld [vmem:[%s1 + $0x18] sm:$0xff]
    %v56 = vld [vmem:[%s2] sm:$0x1]
    %v58 = vlaneseq
    %v59 = vshrl.u32 %v58, 7
    %v60 = vsub.s32 0, %v59
    %v61 = vrot.slane %v56, %v60
    %vm63 = vcmask 261120
    %v65 = vsel %vm63, %v51, 0
    %67 = vmatprep.subr.mxu0 0.0
    %68 = vmatpush1.msra.mxu0 0.0
    %69 = vmatprep.subr.mxu0 0.0
    %70 = vmatpush1.msra.mxu0 0.0
    %71 = vmatprep.subr.mxu0 0.0
    %72 = vmatpush1.msra.mxu0 0.0
    %73 = vmatprep.subr.mxu0 0.0
    %74 = vmatpush1.msra.mxu0 0.0
    %75 = vmatprep.subr.mxu0 0.0
    %76 = vmatpush1.msra.mxu0 0.0
    %77 = vmatprep.subr.mxu0 0.0
    %78 = vmatpush1.msra.mxu0 0.0
    %79 = vmatprep.subr.mxu0 0.0
    %80 = vmatpush1.msra.mxu0 0.0
    %81 = vmatprep.subr.mxu0 0.0
    %82 = vmatpush1.msra.mxu0 0.0
    %83 = vmatprep.subr.mxu0 0.0
    %84 = vmatpush1.msra.mxu0 0.0
    %85 = vmatprep.subr.mxu0 0.0
    %86 = vmatpush1.msra.mxu0 0.0
    %87 = vmatprep.subr.mxu0 0.0
    %88 = vmatpush1.msra.mxu0 0.0
    %89 = vmatprep.subr.mxu0 0.0
    %90 = vmatpush1.msra.mxu0 0.0
    %91 = vmatprep.subr.mxu0 0.0
    %92 = vmatpush1.msra.mxu0 %v55
    %93 = vmatprep.subr.mxu0 0.0
    %94 = vmatpush1.msra.mxu0 %v54
    %95 = vmatprep.subr.mxu0 0.0
    %96 = vmatpush1.msra.mxu0 %v53
    %97 = vmatprep.subr.mxu0 0.0
    %98 = vmatpush1.msra.mxu0 %v52
    %99 = vmatprep.subr.mxu0 0.0
    %100 = vmatpush2.msra.mxu0 0.0
    %101 = vmatprep.subr.mxu0 0.0
    %102 = vmatpush2.msra.mxu0 0.0
    %103 = vmatprep.subr.mxu0 0.0
    %104 = vmatpush2.msra.mxu0 0.0
    %105 = vmatprep.subr.mxu0 0.0
    %106 = vmatpush2.msra.mxu0 0.0
    %107 = vmatprep.subr.mxu0 0.0
    %108 = vmatpush2.msra.mxu0 0.0
    %109 = vmatprep.subr.mxu0 0.0
    %110 = vmatpush2.msra.mxu0 0.0
    %111 = vmatprep.subr.mxu0 0.0
    %112 = vmatpush2.msra.mxu0 0.0
    %113 = vmatprep.subr.mxu0 0.0
    %114 = vmatpush2.msra.mxu0 0.0
    %115 = vmatprep.subr.mxu0 0.0
    %116 = vmatpush2.msra.mxu0 0.0
    %117 = vmatprep.subr.mxu0 0.0
    %118 = vmatpush2.msra.mxu0 0.0
    %119 = vmatprep.subr.mxu0 0.0
    %120 = vmatpush2.msra.mxu0 0.0
    %121 = vmatprep.subr.mxu0 0.0
    %122 = vmatpush2.msra.mxu0 0.0
    %123 = vmatprep.subr.mxu0 0.0
    %124 = vmatpush2.msra.mxu0 0.0
    %125 = vmatprep.subr.mxu0 0.0
    %126 = vmatpush2.msra.mxu0 0.0
    %127 = vmatprep.subr.mxu0 0.0
    %128 = vmatpush2.msra.mxu0 0.0
    %129 = vmatprep.subr.mxu0 0.0
    %130 = vmatpush2.msra.mxu0 0.0
    %131 = vmatprep.mubr.f32.mxu0 0.0
    %132 = vmatmul.mubr.f32.gmra.mxu0 %v65
    %v133 = vpop.f32.mrf.mxu0
    %v134 = vadd.f32 %v61, %v133
    %v135 = vpop.f32.mrf.mxu0
    %136 = vdwg.mxu0
    %vm137 = vcmask 523264
    %v138 = vsel %vm137, %v134, 0.0
    %139 = vadd.xlane.f32.xlu0 %v138
    %v140 = vpop.xlane.xlu0 %139
    %v141 = vrcp.pop 64.0
    %v142 = vmul.f32 %v140, %v141
    %v143 = vsub.f32 %v134, %v142
    %v144 = vmul.f32 %v143, %v143
    %v145 = vsel %vm137, %v144, 0.0
    %146 = vadd.xlane.f32.xlu0 %v145
    %v147 = vpop.xlane.xlu0 %146
    %v148 = vmul.f32 %v147, %v141
    %v149 = vadd.f32 %v148, 1e-05
    %v150 = vrsqrt.pop %v149
    %v151 = vld [vmem:[%s3] sm:$0x1]
    %v153 = vlaneseq
    %v154 = vshrl.u32 %v153, 7
    %v155 = vsub.s32 0, %v154
    %v156 = vrot.slane %v151, %v155
    %v158 = vmul.f32 %v156, %v150
    %v159 = vmul.f32 %v143, %v158
    %v160 = vld [vmem:[%s4] sm:$0x1]
    %v162 = vlaneseq
    %v163 = vshrl.u32 %v162, 7
    %v164 = vsub.s32 0, %v163
    %v165 = vrot.slane %v160, %v164
    %v167 = vadd.f32 %v159, %v165
    %v168 = vmul.f32 %v167, 0.5
    %v169 = vrcp.pop 1.4142135
    %v170 = vmul.f32 %v167, %v169
    %v171 = verf.f32.pop %v170
    %v172 = vadd.f32 %v171, 1.0
    %v173 = vmul.f32 %v168, %v172
    %v174 = vld [vmem:[%s5] sm:$0xff]
    %v175 = vld [vmem:[%s5 + $0x8] sm:$0xff]
    %v176 = vld [vmem:[%s5 + $0x10] sm:$0xff]
    %v177 = vld [vmem:[%s5 + $0x18] sm:$0xff]
    %v178 = vld [vmem:[%s5 + $0x20] sm:$0xff]
    %v179 = vld [vmem:[%s5 + $0x28] sm:$0xff]
    %v180 = vld [vmem:[%s5 + $0x30] sm:$0xff]
    %v181 = vld [vmem:[%s5 + $0x38] sm:$0xff]
    %v183 = vsel %vm137, %v173, 0
    %185 = vmatprep.subr.mxu0 0.0
    %186 = vmatpush1.msra.mxu0 0.0
    %187 = vmatprep.subr.mxu0 0.0
    %188 = vmatpush1.msra.mxu0 0.0
    %189 = vmatprep.subr.mxu0 0.0
    %190 = vmatpush1.msra.mxu0 0.0
    %191 = vmatprep.subr.mxu0 0.0
    %192 = vmatpush1.msra.mxu0 0.0
    %193 = vmatprep.subr.mxu0 0.0
    %194 = vmatpush1.msra.mxu0 0.0
    %195 = vmatprep.subr.mxu0 0.0
    %196 = vmatpush1.msra.mxu0 0.0
    %197 = vmatprep.subr.mxu0 0.0
    %198 = vmatpush1.msra.mxu0 0.0
    %199 = vmatprep.subr.mxu0 0.0
    %200 = vmatpush1.msra.mxu0 0.0
    %201 = vmatprep.subr.mxu0 0.0
    %202 = vmatpush1.msra.mxu0 %v181
    %203 = vmatprep.subr.mxu0 0.0
    %204 = vmatpush1.msra.mxu0 %v180
    %205 = vmatprep.subr.mxu0 0.0
    %206 = vmatpush1.msra.mxu0 %v179
    %207 = vmatprep.subr.mxu0 0.0
    %208 = vmatpush1.msra.mxu0 %v178
    %209 = vmatprep.subr.mxu0 0.0
    %210 = vmatpush1.msra.mxu0 %v177
    %211 = vmatprep.subr.mxu0 0.0
    %212 = vmatpush1.msra.mxu0 %v176
    %213 = vmatprep.subr.mxu0 0.0
    %214 = vmatpush1.msra.mxu0 %v175
    %215 = vmatprep.subr.mxu0 0.0
    %216 = vmatpush1.msra.mxu0 %v174
    %217 = vmatprep.subr.mxu0 0.0
    %218 = vmatpush2.msra.mxu0 0.0
    %219 = vmatprep.subr.mxu0 0.0
    %220 = vmatpush2.msra.mxu0 0.0
    %221 = vmatprep.subr.mxu0 0.0
    %222 = vmatpush2.msra.mxu0 0.0
    %223 = vmatprep.subr.mxu0 0.0
    %224 = vmatpush2.msra.mxu0 0.0
    %225 = vmatprep.subr.mxu0 0.0
    %226 = vmatpush2.msra.mxu0 0.0
    %227 = vmatprep.subr.mxu0 0.0
    %228 = vmatpush2.msra.mxu0 0.0
    %229 = vmatprep.subr.mxu0 0.0
    %230 = vmatpush2.msra.mxu0 0.0
    %231 = vmatprep.subr.mxu0 0.0
    %232 = vmatpush2.msra.mxu0 0.0
    %233 = vmatprep.subr.mxu0 0.0
    %234 = vmatpush2.msra.mxu0 0.0
    %235 = vmatprep.subr.mxu0 0.0
    %236 = vmatpush2.msra.mxu0 0.0
    %237 = vmatprep.subr.mxu0 0.0
    %238 = vmatpush2.msra.mxu0 0.0
    %239 = vmatprep.subr.mxu0 0.0
    %240 = vmatpush2.msra.mxu0 0.0
    %241 = vmatprep.subr.mxu0 0.0
    %242 = vmatpush2.msra.mxu0 0.0
    %243 = vmatprep.subr.mxu0 0.0
    %244 = vmatpush2.msra.mxu0 0.0
    %245 = vmatprep.subr.mxu0 0.0
    %246 = vmatpush2.msra.mxu0 0.0
    %247 = vmatprep.subr.mxu0 0.0
    %248 = vmatpush2.msra.mxu0 0.0
    %249 = vmatprep.mubr.f32.mxu0 0.0
    %250 = vmatmul.mubr.f32.gmra.mxu0 %v183
    %v251 = vpop.f32.mrf.mxu0
    %v252 = vadd.f32 0.0, %v251
    %v253 = vpop.f32.mrf.mxu0
    %254 = vdwg.mxu0
    %v255 = vxor.u32 %v252, 2147483648
    %v256 = vmul.f32 %v255, 1.442695
    %v257 = vpow.pop %v256
    %v258 = vadd.f32 %v257, 1.0
    %v259 = vrcp.pop %v258
    %v260 = vmul.f32 1.0, %v259
    %v261 = vmul.f32 %v252, %v260
    %v262 = vld [vmem:[%s6] sm:$0xf]
    %vm263 = vcmask 31744
    %v265 = vsel %vm263, %v261, 0
    %vm267 = vcmask 1043456
    %v269 = vsel %vm267, %v262, 0
    %271 = vmatprep.subr.mxu0 0.0
    %272 = vmatpush1.msra.mxu0 0.0
    %273 = vmatprep.subr.mxu0 0.0
    %274 = vmatpush1.msra.mxu0 0.0
    %275 = vmatprep.subr.mxu0 0.0
    %276 = vmatpush1.msra.mxu0 0.0
    %277 = vmatprep.subr.mxu0 0.0
    %278 = vmatpush1.msra.mxu0 0.0
    %279 = vmatprep.subr.mxu0 0.0
    %280 = vmatpush1.msra.mxu0 0.0
    %281 = vmatprep.subr.mxu0 0.0
    %282 = vmatpush1.msra.mxu0 0.0
    %283 = vmatprep.subr.mxu0 0.0
    %284 = vmatpush1.msra.mxu0 0.0
    %285 = vmatprep.subr.mxu0 0.0
    %286 = vmatpush1.msra.mxu0 0.0
    %287 = vmatprep.subr.mxu0 0.0
    %288 = vmatpush1.msra.mxu0 0.0
    %289 = vmatprep.subr.mxu0 0.0
    %290 = vmatpush1.msra.mxu0 0.0
    %291 = vmatprep.subr.mxu0 0.0
    %292 = vmatpush1.msra.mxu0 0.0
    %293 = vmatprep.subr.mxu0 0.0
    %294 = vmatpush1.msra.mxu0 0.0
    %295 = vmatprep.subr.mxu0 0.0
    %296 = vmatpush1.msra.mxu0 0.0
    %297 = vmatprep.subr.mxu0 0.0
    %298 = vmatpush1.msra.mxu0 0.0
    %299 = vmatprep.subr.mxu0 0.0
    %300 = vmatpush1.msra.mxu0 0.0
    %301 = vmatprep.subr.mxu0 0.0
    %302 = vmatpush1.msra.mxu0 %v269
    %303 = vmatprep.subr.mxu0 0.0
    %304 = vmatpush2.msra.mxu0 0.0
    %305 = vmatprep.subr.mxu0 0.0
    %306 = vmatpush2.msra.mxu0 0.0
    %307 = vmatprep.subr.mxu0 0.0
    %308 = vmatpush2.msra.mxu0 0.0
    %309 = vmatprep.subr.mxu0 0.0
    %310 = vmatpush2.msra.mxu0 0.0
    %311 = vmatprep.subr.mxu0 0.0
    %312 = vmatpush2.msra.mxu0 0.0
    %313 = vmatprep.subr.mxu0 0.0
    %314 = vmatpush2.msra.mxu0 0.0
    %315 = vmatprep.subr.mxu0 0.0
    %316 = vmatpush2.msra.mxu0 0.0
    %317 = vmatprep.subr.mxu0 0.0
    %318 = vmatpush2.msra.mxu0 0.0
    %319 = vmatprep.subr.mxu0 0.0
    %320 = vmatpush2.msra.mxu0 0.0
    %321 = vmatprep.subr.mxu0 0.0
    %322 = vmatpush2.msra.mxu0 0.0
    %323 = vmatprep.subr.mxu0 0.0
    %324 = vmatpush2.msra.mxu0 0.0
    %325 = vmatprep.subr.mxu0 0.0
    %326 = vmatpush2.msra.mxu0 0.0
    %327 = vmatprep.subr.mxu0 0.0
    %328 = vmatpush2.msra.mxu0 0.0
    %329 = vmatprep.subr.mxu0 0.0
    %330 = vmatpush2.msra.mxu0 0.0
    %331 = vmatprep.subr.mxu0 0.0
    %332 = vmatpush2.msra.mxu0 0.0
    %333 = vmatprep.subr.mxu0 0.0
    %334 = vmatpush2.msra.mxu0 0.0
    %335 = vmatprep.mubr.f32.mxu0 0.0
    %336 = vmatmul.mubr.f32.gmra.mxu0 %v265
    %v337 = vpop.f32.mrf.mxu0
    %v338 = vadd.f32 0.0, %v337
    %v339 = vpop.f32.mrf.mxu0
    %340 = vdwg.mxu0
    %v341 = vxor.u32 %v338, 2147483648
    %v342 = vmul.f32 %v341, 1.442695
    %v343 = vpow.pop %v342
    %v344 = vadd.f32 %v343, 1.0
    %v345 = vrcp.pop %v344
    %v346 = vmul.f32 1.0, %v345
    %v347 = vmul.f32 %v173, %v346
    %v348 = vld [vmem:[%s7] sm:$0xff]
    %v349 = vld [vmem:[%s7 + $0x8] sm:$0xff]
    %v350 = vld [vmem:[%s7 + $0x10] sm:$0xff]
    %v351 = vld [vmem:[%s7 + $0x18] sm:$0xff]
    %v352 = vld [vmem:[%s7 + $0x20] sm:$0xff]
    %v353 = vld [vmem:[%s7 + $0x28] sm:$0xff]
    %v354 = vld [vmem:[%s7 + $0x30] sm:$0xff]
    %v355 = vld [vmem:[%s7 + $0x38] sm:$0xff]
    %v356 = vld [vmem:[%s8] sm:$0x1]
    %v358 = vlaneseq
    %v359 = vshrl.u32 %v358, 7
    %v360 = vsub.s32 0, %v359
    %v361 = vrot.slane %v356, %v360
    %v364 = vsel %vm137, %v347, 0
    %366 = vmatprep.subr.mxu0 0.0
    %367 = vmatpush1.msra.mxu0 0.0
    %368 = vmatprep.subr.mxu0 0.0
    %369 = vmatpush1.msra.mxu0 0.0
    %370 = vmatprep.subr.mxu0 0.0
    %371 = vmatpush1.msra.mxu0 0.0
    %372 = vmatprep.subr.mxu0 0.0
    %373 = vmatpush1.msra.mxu0 0.0
    %374 = vmatprep.subr.mxu0 0.0
    %375 = vmatpush1.msra.mxu0 0.0
    %376 = vmatprep.subr.mxu0 0.0
    %377 = vmatpush1.msra.mxu0 0.0
    %378 = vmatprep.subr.mxu0 0.0
    %379 = vmatpush1.msra.mxu0 0.0
    %380 = vmatprep.subr.mxu0 0.0
    %381 = vmatpush1.msra.mxu0 0.0
    %382 = vmatprep.subr.mxu0 0.0
    %383 = vmatpush1.msra.mxu0 %v355
    %384 = vmatprep.subr.mxu0 0.0
    %385 = vmatpush1.msra.mxu0 %v354
    %386 = vmatprep.subr.mxu0 0.0
    %387 = vmatpush1.msra.mxu0 %v353
    %388 = vmatprep.subr.mxu0 0.0
    %389 = vmatpush1.msra.mxu0 %v352
    %390 = vmatprep.subr.mxu0 0.0
    %391 = vmatpush1.msra.mxu0 %v351
    %392 = vmatprep.subr.mxu0 0.0
    %393 = vmatpush1.msra.mxu0 %v350
    %394 = vmatprep.subr.mxu0 0.0
    %395 = vmatpush1.msra.mxu0 %v349
    %396 = vmatprep.subr.mxu0 0.0
    %397 = vmatpush1.msra.mxu0 %v348
    %398 = vmatprep.subr.mxu0 0.0
    %399 = vmatpush2.msra.mxu0 0.0
    %400 = vmatprep.subr.mxu0 0.0
    %401 = vmatpush2.msra.mxu0 0.0
    %402 = vmatprep.subr.mxu0 0.0
    %403 = vmatpush2.msra.mxu0 0.0
    %404 = vmatprep.subr.mxu0 0.0
    %405 = vmatpush2.msra.mxu0 0.0
    %406 = vmatprep.subr.mxu0 0.0
    %407 = vmatpush2.msra.mxu0 0.0
    %408 = vmatprep.subr.mxu0 0.0
    %409 = vmatpush2.msra.mxu0 0.0
    %410 = vmatprep.subr.mxu0 0.0
    %411 = vmatpush2.msra.mxu0 0.0
    %412 = vmatprep.subr.mxu0 0.0
    %413 = vmatpush2.msra.mxu0 0.0
    %414 = vmatprep.subr.mxu0 0.0
    %415 = vmatpush2.msra.mxu0 0.0
    %416 = vmatprep.subr.mxu0 0.0
    %417 = vmatpush2.msra.mxu0 0.0
    %418 = vmatprep.subr.mxu0 0.0
    %419 = vmatpush2.msra.mxu0 0.0
    %420 = vmatprep.subr.mxu0 0.0
    %421 = vmatpush2.msra.mxu0 0.0
    %422 = vmatprep.subr.mxu0 0.0
    %423 = vmatpush2.msra.mxu0 0.0
    %424 = vmatprep.subr.mxu0 0.0
    %425 = vmatpush2.msra.mxu0 0.0
    %426 = vmatprep.subr.mxu0 0.0
    %427 = vmatpush2.msra.mxu0 0.0
    %428 = vmatprep.subr.mxu0 0.0
    %429 = vmatpush2.msra.mxu0 0.0
    %430 = vmatprep.mubr.f32.mxu0 0.0
    %431 = vmatmul.mubr.f32.gmra.mxu0 %v364
    %v432 = vpop.f32.mrf.mxu0
    %v433 = vadd.f32 %v361, %v432
    %v434 = vpop.f32.mrf.mxu0
    %435 = vdwg.mxu0
    %v436 = vsel %vm63, %v433, 0.0
    %437 = vadd.xlane.f32.xlu0 %v436
    %v438 = vpop.xlane.xlu0 %437
    %v439 = vrcp.pop 32.0
    %v440 = vmul.f32 %v438, %v439
    %v441 = vsub.f32 %v433, %v440
    %v442 = vmul.f32 %v441, %v441
    %v443 = vsel %vm63, %v442, 0.0
    %444 = vadd.xlane.f32.xlu0 %v443
    %v445 = vpop.xlane.xlu0 %444
    %v446 = vmul.f32 %v445, %v439
    %v447 = vadd.f32 %v446, 1e-05
    %v448 = vrsqrt.pop %v447
    %v449 = vld [vmem:[%s9] sm:$0x1]
    %v451 = vlaneseq
    %v452 = vshrl.u32 %v451, 7
    %v453 = vsub.s32 0, %v452
    %v454 = vrot.slane %v449, %v453
    %v456 = vmul.f32 %v454, %v448
    %v457 = vmul.f32 %v441, %v456
    %v458 = vld [vmem:[%s10] sm:$0x1]
    %v460 = vlaneseq
    %v461 = vshrl.u32 %v460, 7
    %v462 = vsub.s32 0, %v461
    %v463 = vrot.slane %v458, %v462
    %v465 = vadd.f32 %v457, %v463
    %v466 = vmul.f32 %v465, 0.5
    %v467 = vmul.f32 %v465, %v169
    %v468 = verf.f32.pop %v467
    %v469 = vadd.f32 %v468, 1.0
    %v470 = vmul.f32 %v466, %v469
    %v471 = vld [vmem:[%s11] sm:$0xff]
    %v472 = vld [vmem:[%s11 + $0x8] sm:$0xff]
    %v473 = vld [vmem:[%s11 + $0x10] sm:$0xff]
    %v474 = vld [vmem:[%s11 + $0x18] sm:$0xff]
    %v476 = vsel %vm63, %v470, 0
    %478 = vmatprep.subr.mxu0 0.0
    %479 = vmatpush1.msra.mxu0 0.0
    %480 = vmatprep.subr.mxu0 0.0
    %481 = vmatpush1.msra.mxu0 0.0
    %482 = vmatprep.subr.mxu0 0.0
    %483 = vmatpush1.msra.mxu0 0.0
    %484 = vmatprep.subr.mxu0 0.0
    %485 = vmatpush1.msra.mxu0 0.0
    %486 = vmatprep.subr.mxu0 0.0
    %487 = vmatpush1.msra.mxu0 0.0
    %488 = vmatprep.subr.mxu0 0.0
    %489 = vmatpush1.msra.mxu0 0.0
    %490 = vmatprep.subr.mxu0 0.0
    %491 = vmatpush1.msra.mxu0 0.0
    %492 = vmatprep.subr.mxu0 0.0
    %493 = vmatpush1.msra.mxu0 0.0
    %494 = vmatprep.subr.mxu0 0.0
    %495 = vmatpush1.msra.mxu0 0.0
    %496 = vmatprep.subr.mxu0 0.0
    %497 = vmatpush1.msra.mxu0 0.0
    %498 = vmatprep.subr.mxu0 0.0
    %499 = vmatpush1.msra.mxu0 0.0
    %500 = vmatprep.subr.mxu0 0.0
    %501 = vmatpush1.msra.mxu0 0.0
    %502 = vmatprep.subr.mxu0 0.0
    %503 = vmatpush1.msra.mxu0 %v474
    %504 = vmatprep.subr.mxu0 0.0
    %505 = vmatpush1.msra.mxu0 %v473
    %506 = vmatprep.subr.mxu0 0.0
    %507 = vmatpush1.msra.mxu0 %v472
    %508 = vmatprep.subr.mxu0 0.0
    %509 = vmatpush1.msra.mxu0 %v471
    %510 = vmatprep.subr.mxu0 0.0
    %511 = vmatpush2.msra.mxu0 0.0
    %512 = vmatprep.subr.mxu0 0.0
    %513 = vmatpush2.msra.mxu0 0.0
    %514 = vmatprep.subr.mxu0 0.0
    %515 = vmatpush2.msra.mxu0 0.0
    %516 = vmatprep.subr.mxu0 0.0
    %517 = vmatpush2.msra.mxu0 0.0
    %518 = vmatprep.subr.mxu0 0.0
    %519 = vmatpush2.msra.mxu0 0.0
    %520 = vmatprep.subr.mxu0 0.0
    %521 = vmatpush2.msra.mxu0 0.0
    %522 = vmatprep.subr.mxu0 0.0
    %523 = vmatpush2.msra.mxu0 0.0
    %524 = vmatprep.subr.mxu0 0.0
    %525 = vmatpush2.msra.mxu0 0.0
    %526 = vmatprep.subr.mxu0 0.0
    %527 = vmatpush2.msra.mxu0 0.0
    %528 = vmatprep.subr.mxu0 0.0
    %529 = vmatpush2.msra.mxu0 0.0
    %530 = vmatprep.subr.mxu0 0.0
    %531 = vmatpush2.msra.mxu0 0.0
    %532 = vmatprep.subr.mxu0 0.0
    %533 = vmatpush2.msra.mxu0 0.0
    %534 = vmatprep.subr.mxu0 0.0
    %535 = vmatpush2.msra.mxu0 0.0
    %536 = vmatprep.subr.mxu0 0.0
    %537 = vmatpush2.msra.mxu0 0.0
    %538 = vmatprep.subr.mxu0 0.0
    %539 = vmatpush2.msra.mxu0 0.0
    %540 = vmatprep.subr.mxu0 0.0
    %541 = vmatpush2.msra.mxu0 0.0
    %542 = vmatprep.mubr.f32.mxu0 0.0
    %543 = vmatmul.mubr.f32.gmra.mxu0 %v476
    %v544 = vpop.f32.mrf.mxu0
    %v545 = vadd.f32 0.0, %v544
    %v546 = vpop.f32.mrf.mxu0
    %547 = vdwg.mxu0
    %v548 = vxor.u32 %v545, 2147483648
    %v549 = vmul.f32 %v548, 1.442695
    %v550 = vpow.pop %v549
    %v551 = vadd.f32 %v550, 1.0
    %v552 = vrcp.pop %v551
    %v553 = vmul.f32 1.0, %v552
    %v554 = vmul.f32 %v545, %v553
    %v555 = vld [vmem:[%s12] sm:$0x3]
    %vm556 = vcmask 15360
    %v558 = vsel %vm556, %v554, 0
    %vm560 = vcmask 1041408
    %v562 = vsel %vm560, %v555, 0
    %564 = vmatprep.subr.mxu0 0.0
    %565 = vmatpush1.msra.mxu0 0.0
    %566 = vmatprep.subr.mxu0 0.0
    %567 = vmatpush1.msra.mxu0 0.0
    %568 = vmatprep.subr.mxu0 0.0
    %569 = vmatpush1.msra.mxu0 0.0
    %570 = vmatprep.subr.mxu0 0.0
    %571 = vmatpush1.msra.mxu0 0.0
    %572 = vmatprep.subr.mxu0 0.0
    %573 = vmatpush1.msra.mxu0 0.0
    %574 = vmatprep.subr.mxu0 0.0
    %575 = vmatpush1.msra.mxu0 0.0
    %576 = vmatprep.subr.mxu0 0.0
    %577 = vmatpush1.msra.mxu0 0.0
    %578 = vmatprep.subr.mxu0 0.0
    %579 = vmatpush1.msra.mxu0 0.0
    %580 = vmatprep.subr.mxu0 0.0
    %581 = vmatpush1.msra.mxu0 0.0
    %582 = vmatprep.subr.mxu0 0.0
    %583 = vmatpush1.msra.mxu0 0.0
    %584 = vmatprep.subr.mxu0 0.0
    %585 = vmatpush1.msra.mxu0 0.0
    %586 = vmatprep.subr.mxu0 0.0
    %587 = vmatpush1.msra.mxu0 0.0
    %588 = vmatprep.subr.mxu0 0.0
    %589 = vmatpush1.msra.mxu0 0.0
    %590 = vmatprep.subr.mxu0 0.0
    %591 = vmatpush1.msra.mxu0 0.0
    %592 = vmatprep.subr.mxu0 0.0
    %593 = vmatpush1.msra.mxu0 0.0
    %594 = vmatprep.subr.mxu0 0.0
    %595 = vmatpush1.msra.mxu0 %v562
    %596 = vmatprep.subr.mxu0 0.0
    %597 = vmatpush2.msra.mxu0 0.0
    %598 = vmatprep.subr.mxu0 0.0
    %599 = vmatpush2.msra.mxu0 0.0
    %600 = vmatprep.subr.mxu0 0.0
    %601 = vmatpush2.msra.mxu0 0.0
    %602 = vmatprep.subr.mxu0 0.0
    %603 = vmatpush2.msra.mxu0 0.0
    %604 = vmatprep.subr.mxu0 0.0
    %605 = vmatpush2.msra.mxu0 0.0
    %606 = vmatprep.subr.mxu0 0.0
    %607 = vmatpush2.msra.mxu0 0.0
    %608 = vmatprep.subr.mxu0 0.0
    %609 = vmatpush2.msra.mxu0 0.0
    %610 = vmatprep.subr.mxu0 0.0
    %611 = vmatpush2.msra.mxu0 0.0
    %612 = vmatprep.subr.mxu0 0.0
    %613 = vmatpush2.msra.mxu0 0.0
    %614 = vmatprep.subr.mxu0 0.0
    %615 = vmatpush2.msra.mxu0 0.0
    %616 = vmatprep.subr.mxu0 0.0
    %617 = vmatpush2.msra.mxu0 0.0
    %618 = vmatprep.subr.mxu0 0.0
    %619 = vmatpush2.msra.mxu0 0.0
    %620 = vmatprep.subr.mxu0 0.0
    %621 = vmatpush2.msra.mxu0 0.0
    %622 = vmatprep.subr.mxu0 0.0
    %623 = vmatpush2.msra.mxu0 0.0
    %624 = vmatprep.subr.mxu0 0.0
    %625 = vmatpush2.msra.mxu0 0.0
    %626 = vmatprep.subr.mxu0 0.0
    %627 = vmatpush2.msra.mxu0 0.0
    %628 = vmatprep.mubr.f32.mxu0 0.0
    %629 = vmatmul.mubr.f32.gmra.mxu0 %v558
    %v630 = vpop.f32.mrf.mxu0
    %v631 = vadd.f32 0.0, %v630
    %v632 = vpop.f32.mrf.mxu0
    %633 = vdwg.mxu0
    %v634 = vxor.u32 %v631, 2147483648
    %v635 = vmul.f32 %v634, 1.442695
    %v636 = vpow.pop %v635
    %v637 = vadd.f32 %v636, 1.0
    %v638 = vrcp.pop %v637
    %v639 = vmul.f32 1.0, %v638
    %v640 = vmul.f32 %v470, %v639
    %v641 = vld [vmem:[%s13] sm:$0xff]
    %v642 = vld [vmem:[%s13 + $0x8] sm:$0xff]
    %v643 = vld [vmem:[%s13 + $0x10] sm:$0xff]
    %v644 = vld [vmem:[%s13 + $0x18] sm:$0xff]
    %v645 = vld [vmem:[%s14] sm:$0x1]
    %v647 = vlaneseq
    %v648 = vshrl.u32 %v647, 7
    %v649 = vsub.s32 0, %v648
    %v650 = vrot.slane %v645, %v649
    %v653 = vsel %vm63, %v640, 0
    %655 = vmatprep.subr.mxu0 0.0
    %656 = vmatpush1.msra.mxu0 0.0
    %657 = vmatprep.subr.mxu0 0.0
    %658 = vmatpush1.msra.mxu0 0.0
    %659 = vmatprep.subr.mxu0 0.0
    %660 = vmatpush1.msra.mxu0 0.0
    %661 = vmatprep.subr.mxu0 0.0
    %662 = vmatpush1.msra.mxu0 0.0
    %663 = vmatprep.subr.mxu0 0.0
    %664 = vmatpush1.msra.mxu0 0.0
    %665 = vmatprep.subr.mxu0 0.0
    %666 = vmatpush1.msra.mxu0 0.0
    %667 = vmatprep.subr.mxu0 0.0
    %668 = vmatpush1.msra.mxu0 0.0
    %669 = vmatprep.subr.mxu0 0.0
    %670 = vmatpush1.msra.mxu0 0.0
    %671 = vmatprep.subr.mxu0 0.0
    %672 = vmatpush1.msra.mxu0 0.0
    %673 = vmatprep.subr.mxu0 0.0
    %674 = vmatpush1.msra.mxu0 0.0
    %675 = vmatprep.subr.mxu0 0.0
    %676 = vmatpush1.msra.mxu0 0.0
    %677 = vmatprep.subr.mxu0 0.0
    %678 = vmatpush1.msra.mxu0 0.0
    %679 = vmatprep.subr.mxu0 0.0
    %680 = vmatpush1.msra.mxu0 %v644
    %681 = vmatprep.subr.mxu0 0.0
    %682 = vmatpush1.msra.mxu0 %v643
    %683 = vmatprep.subr.mxu0 0.0
    %684 = vmatpush1.msra.mxu0 %v642
    %685 = vmatprep.subr.mxu0 0.0
    %686 = vmatpush1.msra.mxu0 %v641
    %687 = vmatprep.subr.mxu0 0.0
    %688 = vmatpush2.msra.mxu0 0.0
    %689 = vmatprep.subr.mxu0 0.0
    %690 = vmatpush2.msra.mxu0 0.0
    %691 = vmatprep.subr.mxu0 0.0
    %692 = vmatpush2.msra.mxu0 0.0
    %693 = vmatprep.subr.mxu0 0.0
    %694 = vmatpush2.msra.mxu0 0.0
    %695 = vmatprep.subr.mxu0 0.0
    %696 = vmatpush2.msra.mxu0 0.0
    %697 = vmatprep.subr.mxu0 0.0
    %698 = vmatpush2.msra.mxu0 0.0
    %699 = vmatprep.subr.mxu0 0.0
    %700 = vmatpush2.msra.mxu0 0.0
    %701 = vmatprep.subr.mxu0 0.0
    %702 = vmatpush2.msra.mxu0 0.0
    %703 = vmatprep.subr.mxu0 0.0
    %704 = vmatpush2.msra.mxu0 0.0
    %705 = vmatprep.subr.mxu0 0.0
    %706 = vmatpush2.msra.mxu0 0.0
    %707 = vmatprep.subr.mxu0 0.0
    %708 = vmatpush2.msra.mxu0 0.0
    %709 = vmatprep.subr.mxu0 0.0
    %710 = vmatpush2.msra.mxu0 0.0
    %711 = vmatprep.subr.mxu0 0.0
    %712 = vmatpush2.msra.mxu0 0.0
    %713 = vmatprep.subr.mxu0 0.0
    %714 = vmatpush2.msra.mxu0 0.0
    %715 = vmatprep.subr.mxu0 0.0
    %716 = vmatpush2.msra.mxu0 0.0
    %717 = vmatprep.subr.mxu0 0.0
    %718 = vmatpush2.msra.mxu0 0.0
    %719 = vmatprep.mubr.f32.mxu0 0.0
    %720 = vmatmul.mubr.f32.gmra.mxu0 %v653
    %v721 = vpop.f32.mrf.mxu0
    %v722 = vadd.f32 %v650, %v721
    %v723 = vpop.f32.mrf.mxu0
    %724 = vdwg.mxu0
    %vm725 = vcmask 64512
    %726 = vst.msk [vmem:[#allocation2] sm:$0xff] %vm725, %v722
    // Predicated region
    $region62: #{tpu_custom_call.1} parent=1 // pred_check
      _
    $region63: #{tpu_custom_call.1} parent=1 // pred_check_branch
      %728 = sbr.rel (0) target = $region65
    $region64: #{tpu_custom_call.1} parent=1 // pred_region
      %s730 = ssub.s32 128, 128
      %731 = vsyncadd [#allocation3], %s730
      %s733 = sshll.u32 [#allocation2], 4
      %s734 = int_to_ptr.vmem [resolvable:$true] %s733
      %736 = dma.vmem_to_hbm [thread:$0]  %s734, 128, %s15, [#allocation3]
    $region65: #{tpu_custom_call.1} parent=1 // pred_fallthru
      _
    // Predicated region
    $region66: #{tpu_custom_call.1} parent=1 // pred_check
      _
    $region67: #{tpu_custom_call.1} parent=1 // pred_check_branch
      %738 = sbr.rel (0) target = $region69
    $region68: #{tpu_custom_call.1} parent=1 // pred_region
      %739 = dma.done [#allocation3], 128
    $region69: #{tpu_custom_call.1} parent=1 // pred_fallthru
      _
    %740 = vsyncpa [#allocation3], 1

</llo_original>
